<compile_context>
chip_gen: v6e
topology: v6e:2x2x1
jax: 0.10.0
libtpu: 0.0.40
codegen_flags: <defaults>
</compile_context>

<pallas_src>
import jax
import jax.numpy as jnp
from jax.experimental import pallas as pl
from jax.experimental.pallas import tpu as pltpu

_LANE = 128


def _round_up(x, m):
    return ((x + m - 1) // m) * m


def _vmem_params():
    """(tile budget bytes, scoped vmem_limit bytes), gated on chip VMEM size."""
    cap = 64 << 20  # conservative default (v7x per-TC VMEM)
    try:
        cap = int(getattr(pltpu.get_tpu_info(), "vmem_capacity_bytes", cap)) or cap
    except Exception:
        pass
    # Keep ~2x headroom between the tile budget and the scoped limit so
    # f32-promoted intermediates of bf16 inputs can never blow the limit.
    limit = min(100 << 20, max(32 << 20, cap - (16 << 20)))
    budget = min(64 << 20, max(16 << 20, limit // 2))
    return budget, limit


def _choose_block_b(B, D, itemsize, budget, gran):
    """Largest sublane-granular batch tile fitting the double-buffered budget."""
    if B <= gran:
        return B  # block == full batch dim: trivially legal layout
    # double-buffered input (3*D) + output (D) rows
    bytes_per_row = 2 * (3 * D + D) * itemsize
    bb = max(gran, (budget // bytes_per_row) // gran * gran)
    bb = min(bb, 4096 if budget > (32 << 20) else 2048)   # diminishing returns
    bb = min(bb, (B // gran) * gran)                       # never exceed B
    # Keep >=2 grid steps only when B is large enough that each half is still
    # a near-roofline tile: feeds both v7x TensorCores, ~free on v5e/v6e.
    if B >= 1024:
        bb = min(bb, _round_up(pl.cdiv(B, 2), gran))
    return bb


def irt_kernel(x_ref, p_ref):
    # x_ref: (block_b, 3*d) in VMEM (z | a | b laid out along lanes)
    # p_ref: (block_b, d)   in VMEM
    d = p_ref.shape[-1]
    z = x_ref[:, 0:d].astype(jnp.float32)
    a = x_ref[:, d:2 * d].astype(jnp.float32)
    b = x_ref[:, 2 * d:3 * d].astype(jnp.float32)
    # sigmoid via lax.logistic -> EUP transcendental slot (no f32 divide on VALU)
    p_ref[...] = jax.nn.sigmoid(a * (z - b)).astype(p_ref.dtype)


def _run(x_flat, n_rows, d, dtype, block_b, vmem_limit):
    """pallas_call on an already-flattened (n_rows, 3*d) input -> (n_rows, d)."""
    itemsize = jnp.dtype(dtype).itemsize
    grid = (pl.cdiv(n_rows, block_b),)
    return pl.pallas_call(
        irt_kernel,
        out_shape=jax.ShapeDtypeStruct((n_rows, d), dtype),
        grid_spec=pltpu.PrefetchScalarGridSpec(
            num_scalar_prefetch=0,
            grid=grid,
            in_specs=[pl.BlockSpec((block_b, 3 * d), lambda i: (i, 0))],
            out_specs=pl.BlockSpec((block_b, d), lambda i: (i, 0)),
        ),
        compiler_params=pltpu.CompilerParams(
            dimension_semantics=("parallel",),
            vmem_limit_bytes=vmem_limit,
        ),
        cost_estimate=pl.CostEstimate(
            flops=2 * n_rows * d,
            transcendentals=n_rows * d,
            bytes_accessed=4 * n_rows * d * itemsize,
        ),
    )(x_flat)


def irt_net(x, *, block_b=None):
    """x: (B, 3, D) float32/bfloat16 -> p: (B, D) same dtype."""
    B, C, D = x.shape
    assert C == 3, "IRTNet expects 3 channels: z, a, b"
    dtype = x.dtype
    itemsize = jnp.dtype(dtype).itemsize
    gran = max(8, 32 // itemsize)          # sublane packing: 8 rows f32, 16 bf16
    budget, vmem_limit = _vmem_params()

    # Extreme-D escape hatch: if even a `gran`-row tile cannot fit the budget,
    # chunk D in the wrapper (extra HBM pass, but only in this regime).
    max_d = budget // (2 * 4 * itemsize * gran)
    if D > max_d:
        chunk = max(_LANE, (max_d // _LANE) * _LANE)
        outs = [irt_net(x[:, :, lo:lo + chunk], block_b=block_b)
                for lo in range(0, D, chunk)]
        return jnp.concatenate(outs, axis=-1)

    if block_b is None:
        block_b = _choose_block_b(B, D, itemsize, budget, gran)

    x_flat = x.reshape(B, 3 * D)  # contiguous reshape: free

    if D % _LANE == 0:
        # Lane-aligned channel slices, unmasked stores: the fast, proven path.
        return _run(x_flat, B, D, dtype, block_b, vmem_limit)

    try:
        # Unaligned D handled inside the kernel via static lane-offset slices
        # (Mosaic layout offsets + lane rotates); avoids the extra pad/slice
        # HBM passes around the kernel.
        return _run(x_flat, B, D, dtype, block_b, vmem_limit)
    except Exception:
        # Robustness fallback only: lane-pad D in the wrapper (costs one extra
        # HBM read+write pair) if this toolchain rejects the unaligned slices.
        Dp = _round_up(D, _LANE)
        xp = jnp.pad(x, ((0, 0), (0, 0), (0, Dp - D))).reshape(B, 3 * Dp)
        return _run(xp, B, Dp, dtype, block_b, vmem_limit)[:, :D]


def _reference(x):
    xf = x.astype(jnp.float32)
    z, a, b = xf[:, 0], xf[:, 1], xf[:, 2]
    return 1.0 / (1.0 + jnp.exp(-(a * (z - b))))


if __name__ == "__main__":
    key = jax.random.PRNGKey(0)
    k1, k2, k3 = jax.random.split(key, 3)

    # Main case: lane-aligned D, single large batch tile (block_b == B).
    x = jax.random.normal(k1, (64, 3, 256), dtype=jnp.float32)
    p = jax.block_until_ready(irt_net(x))
    assert p.shape == (64, 256)
    assert jnp.allclose(p, _reference(x), atol=1e-5, rtol=1e-5), "mismatch: aligned"

    # Ragged case: B not a multiple of the sublane tile, D not a multiple of 128.
    x2 = jax.random.normal(k2, (10, 3, 200), dtype=jnp.float32)
    p2 = jax.block_until_ready(irt_net(x2))
    assert p2.shape == (10, 200)
    assert jnp.allclose(p2, _reference(x2), atol=1e-5, rtol=1e-5), "mismatch: ragged"

    # bf16 I/O path (math is promoted to f32 inside the kernel).
    x3 = jax.random.normal(k3, (16, 3, 128), dtype=jnp.bfloat16)
    p3 = jax.block_until_ready(irt_net(x3))
    assert p3.shape == (16, 128) and p3.dtype == jnp.bfloat16
    assert jnp.allclose(p3.astype(jnp.float32), _reference(x3),
                        atol=2e-2, rtol=2e-2), "mismatch: bf16"

    print("KERNEL_OK")
</pallas_src>

<mosaic_0001>
module attributes {stable_mosaic.version = 11 : i64} {
  func.func @irt_kernel(%arg0: i32, %arg1: memref<64x768xf32, #tpu.memory_space<vmem>>, %arg2: memref<64x256xf32, #tpu.memory_space<vmem>>) attributes {dimension_semantics = [#tpu.dimension_semantics<parallel>], iteration_bounds = array<i64: 1>, scalar_prefetch = 0 : i64, scratch_operands = 0 : i64, tpu.core_type = #tpu.core_type<tc>, window_params = [{transform_indices = @transform_0, window_bounds = array<i64: 64, 768>}, {transform_indices = @transform_1, window_bounds = array<i64: 64, 256>}]} {
    %c0 = arith.constant 0 : index
    %c0_0 = arith.constant 0 : index
    %0 = vector.load %arg1[%c0, %c0_0] : memref<64x768xf32, #tpu.memory_space<vmem>>, vector<64x256xf32>
    %c0_1 = arith.constant 0 : index
    %c256 = arith.constant 256 : index
    %1 = vector.load %arg1[%c0_1, %c256] : memref<64x768xf32, #tpu.memory_space<vmem>>, vector<64x256xf32>
    %c0_2 = arith.constant 0 : index
    %c512 = arith.constant 512 : index
    %2 = vector.load %arg1[%c0_2, %c512] : memref<64x768xf32, #tpu.memory_space<vmem>>, vector<64x256xf32>
    %3 = arith.subf %0, %2 : vector<64x256xf32>
    %4 = arith.mulf %1, %3 : vector<64x256xf32>
    %5 = arith.negf %4 : vector<64x256xf32>
    %6 = math.exp %5 : vector<64x256xf32>
    %cst = arith.constant 1.000000e+00 : f32
    %7 = vector.broadcast %cst : f32 to vector<64x256xf32>
    %8 = arith.addf %7, %6 : vector<64x256xf32>
    %9 = arith.divf %7, %8 : vector<64x256xf32>
    %c0_3 = arith.constant 0 : index
    %c0_4 = arith.constant 0 : index
    %10 = vector.load %arg2[%c0_3, %c0_4] : memref<64x256xf32, #tpu.memory_space<vmem>>, vector<64x256xf32>
    tpu.vector_store %arg2[%c0_3, %c0_4], %9 {strides = array<i32>} : memref<64x256xf32, #tpu.memory_space<vmem>>, vector<64x256xf32>,
    return
  }
  func.func @transform_0(%arg0: i32) -> (i32, i32) {
    %c0_i32 = arith.constant 0 : i32
    %c0_i32_0 = arith.constant 0 : i32
    return %arg0, %c0_i32 : i32, i32
  }
  func.func @transform_1(%arg0: i32) -> (i32, i32) {
    %c0_i32 = arith.constant 0 : i32
    %c0_i32_0 = arith.constant 0 : i32
    return %arg0, %c0_i32 : i32, i32
  }
}

</mosaic_0001>

<llo_original>
// kernel: tpu_custom_call.1
$region0: #{tpu_custom_call.1}
  #allocation0 [shape = 'u32[]', space=smem, size = 0x4, offset = 0x4, fixed_abs, tag = 'smem constant byte address 0x4 - core index']
  #allocation1 [shape = 'u32[144,128]{1,0:T(1,128)}', space=vmem, size = 0x12000, scoped, tag = 'internal scratch']
  %s0 = inlined_call_operand.hbm [shape: f32[64,768], index: 0, kind: input, shape index: {}]
  %s1 = inlined_call_operand.hbm [shape: f32[64,256], index: 1, kind: output, shape index: {}]
  %s2 = sld [smem:[#allocation0]]
  $region18: #{tpu_custom_call.1} parent=0
    _
  %s4 = ssub.s32 1, %s2
  %s5 = scalar_select 0, %s4, %s2
  $region1: #{tpu_custom_call.1} parent=0
    #allocation2 [shape = 'u8[196608]{0}', space=vmem, size = 0x30000, scoped, tag = 'input window, operand 0, single buffered']
    #allocation3 [shape = 's32[1]{0}', space=sflag, size = 0x4, scoped, tag = 'scoped memory for tpu_custom_call.1']
    #allocation4 [shape = 's32[1]{0}', space=sflag, size = 0x4, scoped, tag = 'scoped memory for tpu_custom_call.1']
    #allocation5 [shape = 'u8[65536]{0}', space=vmem, size = 0x10000, scoped, tag = 'output window, operand 0, single buffered']
    %6 = vsyncpa [#allocation3], 0
    %7 = vsyncpa [#allocation4], 0
    // Predicated region
    $region2: #{tpu_custom_call.1} parent=1 // pred_check
      _
    $region3: #{tpu_custom_call.1} parent=1 // pred_check_branch
      %9 = sbr.rel (0) target = $region5
    $region4: #{tpu_custom_call.1} parent=1 // pred_region
      %s11 = ssub.s32 6144, 6144
      %12 = vsyncadd [#allocation3], %s11
      %s13 = sshll.u32 [#allocation2], 4
      %s14 = int_to_ptr.vmem [resolvable:$true] %s13
      %19 = dma.hbm_to_vmem [thread:$0]  %s0, 6144, %s14, [#allocation3], 768, 768, 48
    $region5: #{tpu_custom_call.1} parent=1 // pred_fallthru
      _
    // Predicated region
    $region6: #{tpu_custom_call.1} parent=1 // pred_check
      _
    $region7: #{tpu_custom_call.1} parent=1 // pred_check_branch
      %21 = sbr.rel (0) target = $region9
    $region8: #{tpu_custom_call.1} parent=1 // pred_region
      %22 = dma.done [#allocation3], 6144
    $region9: #{tpu_custom_call.1} parent=1 // pred_fallthru
      _
    %v23 = vld [vmem:[#allocation2] sm:$0xff]
    %v24 = vld [vmem:[#allocation2 + $0x8] sm:$0xff]
    %v25 = vld [vmem:[#allocation2 + $0x30] sm:$0xff]
    %v26 = vld [vmem:[#allocation2 + $0x38] sm:$0xff]
    %v27 = vld [vmem:[#allocation2 + $0x60] sm:$0xff]
    %v28 = vld [vmem:[#allocation2 + $0x68] sm:$0xff]
    %v29 = vld [vmem:[#allocation2 + $0x90] sm:$0xff]
    %v30 = vld [vmem:[#allocation2 + $0x98] sm:$0xff]
    %v31 = vld [vmem:[#allocation2 + $0xc0] sm:$0xff]
    %v32 = vld [vmem:[#allocation2 + $0xc8] sm:$0xff]
    %v33 = vld [vmem:[#allocation2 + $0xf0] sm:$0xff]
    %v34 = vld [vmem:[#allocation2 + $0xf8] sm:$0xff]
    %v35 = vld [vmem:[#allocation2 + $0x120] sm:$0xff]
    %v36 = vld [vmem:[#allocation2 + $0x128] sm:$0xff]
    %v37 = vld [vmem:[#allocation2 + $0x150] sm:$0xff]
    %v38 = vld [vmem:[#allocation2 + $0x158] sm:$0xff]
    %v39 = vld [vmem:[#allocation2 + $0x10] sm:$0xff]
    %v40 = vld [vmem:[#allocation2 + $0x18] sm:$0xff]
    %v41 = vld [vmem:[#allocation2 + $0x40] sm:$0xff]
    %v42 = vld [vmem:[#allocation2 + $0x48] sm:$0xff]
    %v43 = vld [vmem:[#allocation2 + $0x70] sm:$0xff]
    %v44 = vld [vmem:[#allocation2 + $0x78] sm:$0xff]
    %v45 = vld [vmem:[#allocation2 + $0xa0] sm:$0xff]
    %v46 = vld [vmem:[#allocation2 + $0xa8] sm:$0xff]
    %v47 = vld [vmem:[#allocation2 + $0xd0] sm:$0xff]
    %v48 = vld [vmem:[#allocation2 + $0xd8] sm:$0xff]
    %v49 = vld [vmem:[#allocation2 + $0x100] sm:$0xff]
    %v50 = vld [vmem:[#allocation2 + $0x108] sm:$0xff]
    %v51 = vld [vmem:[#allocation2 + $0x130] sm:$0xff]
    %v52 = vld [vmem:[#allocation2 + $0x138] sm:$0xff]
    %v53 = vld [vmem:[#allocation2 + $0x160] sm:$0xff]
    %v54 = vld [vmem:[#allocation2 + $0x168] sm:$0xff]
    %v55 = vld [vmem:[#allocation2 + $0x20] sm:$0xff]
    %v56 = vld [vmem:[#allocation2 + $0x28] sm:$0xff]
    %v57 = vld [vmem:[#allocation2 + $0x50] sm:$0xff]
    %v58 = vld [vmem:[#allocation2 + $0x58] sm:$0xff]
    %v59 = vld [vmem:[#allocation2 + $0x80] sm:$0xff]
    %v60 = vld [vmem:[#allocation2 + $0x88] sm:$0xff]
    %v61 = vld [vmem:[#allocation2 + $0xb0] sm:$0xff]
    %v62 = vld [vmem:[#allocation2 + $0xb8] sm:$0xff]
    %v63 = vld [vmem:[#allocation2 + $0xe0] sm:$0xff]
    %v64 = vld [vmem:[#allocation2 + $0xe8] sm:$0xff]
    %v65 = vld [vmem:[#allocation2 + $0x110] sm:$0xff]
    %v66 = vld [vmem:[#allocation2 + $0x118] sm:$0xff]
    %v67 = vld [vmem:[#allocation2 + $0x140] sm:$0xff]
    %v68 = vld [vmem:[#allocation2 + $0x148] sm:$0xff]
    %v69 = vld [vmem:[#allocation2 + $0x170] sm:$0xff]
    %v70 = vld [vmem:[#allocation2 + $0x178] sm:$0xff]
    %v71 = vsub.f32 %v23, %v55
    %v72 = vsub.f32 %v24, %v56
    %v73 = vsub.f32 %v25, %v57
    %v74 = vsub.f32 %v26, %v58
    %v75 = vsub.f32 %v27, %v59
    %v76 = vsub.f32 %v28, %v60
    %v77 = vsub.f32 %v29, %v61
    %v78 = vsub.f32 %v30, %v62
    %v79 = vsub.f32 %v31, %v63
    %v80 = vsub.f32 %v32, %v64
    %v81 = vsub.f32 %v33, %v65
    %v82 = vsub.f32 %v34, %v66
    %v83 = vsub.f32 %v35, %v67
    %v84 = vsub.f32 %v36, %v68
    %v85 = vsub.f32 %v37, %v69
    %v86 = vsub.f32 %v38, %v70
    %v87 = vmul.f32 %v39, %v71
    %v88 = vmul.f32 %v40, %v72
    %v89 = vmul.f32 %v41, %v73
    %v90 = vmul.f32 %v42, %v74
    %v91 = vmul.f32 %v43, %v75
    %v92 = vmul.f32 %v44, %v76
    %v93 = vmul.f32 %v45, %v77
    %v94 = vmul.f32 %v46, %v78
    %v95 = vmul.f32 %v47, %v79
    %v96 = vmul.f32 %v48, %v80
    %v97 = vmul.f32 %v49, %v81
    %v98 = vmul.f32 %v50, %v82
    %v99 = vmul.f32 %v51, %v83
    %v100 = vmul.f32 %v52, %v84
    %v101 = vmul.f32 %v53, %v85
    %v102 = vmul.f32 %v54, %v86
    %v103 = vxor.u32 %v87, 2147483648
    %v104 = vxor.u32 %v88, 2147483648
    %v105 = vxor.u32 %v89, 2147483648
    %v106 = vxor.u32 %v90, 2147483648
    %v107 = vxor.u32 %v91, 2147483648
    %v108 = vxor.u32 %v92, 2147483648
    %v109 = vxor.u32 %v93, 2147483648
    %v110 = vxor.u32 %v94, 2147483648
    %v111 = vxor.u32 %v95, 2147483648
    %v112 = vxor.u32 %v96, 2147483648
    %v113 = vxor.u32 %v97, 2147483648
    %v114 = vxor.u32 %v98, 2147483648
    %v115 = vxor.u32 %v99, 2147483648
    %v116 = vxor.u32 %v100, 2147483648
    %v117 = vxor.u32 %v101, 2147483648
    %v118 = vxor.u32 %v102, 2147483648
    %v119 = vmul.f32 %v103, 1.442695
    %v120 = vpow.pop %v119
    %v121 = vmul.f32 %v104, 1.442695
    %v122 = vpow.pop %v121
    %v123 = vmul.f32 %v105, 1.442695
    %v124 = vpow.pop %v123
    %v125 = vmul.f32 %v106, 1.442695
    %v126 = vpow.pop %v125
    %v127 = vmul.f32 %v107, 1.442695
    %v128 = vpow.pop %v127
    %v129 = vmul.f32 %v108, 1.442695
    %v130 = vpow.pop %v129
    %v131 = vmul.f32 %v109, 1.442695
    %v132 = vpow.pop %v131
    %v133 = vmul.f32 %v110, 1.442695
    %v134 = vpow.pop %v133
    %v135 = vmul.f32 %v111, 1.442695
    %v136 = vpow.pop %v135
    %v137 = vmul.f32 %v112, 1.442695
    %v138 = vpow.pop %v137
    %v139 = vmul.f32 %v113, 1.442695
    %v140 = vpow.pop %v139
    %v141 = vmul.f32 %v114, 1.442695
    %v142 = vpow.pop %v141
    %v143 = vmul.f32 %v115, 1.442695
    %v144 = vpow.pop %v143
    %v145 = vmul.f32 %v116, 1.442695
    %v146 = vpow.pop %v145
    %v147 = vmul.f32 %v117, 1.442695
    %v148 = vpow.pop %v147
    %v149 = vmul.f32 %v118, 1.442695
    %v150 = vpow.pop %v149
    %v151 = vadd.f32 %v120, 1.0
    %v152 = vadd.f32 %v122, 1.0
    %v153 = vadd.f32 %v124, 1.0
    %v154 = vadd.f32 %v126, 1.0
    %v155 = vadd.f32 %v128, 1.0
    %v156 = vadd.f32 %v130, 1.0
    %v157 = vadd.f32 %v132, 1.0
    %v158 = vadd.f32 %v134, 1.0
    %v159 = vadd.f32 %v136, 1.0
    %v160 = vadd.f32 %v138, 1.0
    %v161 = vadd.f32 %v140, 1.0
    %v162 = vadd.f32 %v142, 1.0
    %v163 = vadd.f32 %v144, 1.0
    %v164 = vadd.f32 %v146, 1.0
    %v165 = vadd.f32 %v148, 1.0
    %v166 = vadd.f32 %v150, 1.0
    %v167 = vrcp.pop %v151
    %v168 = vmul.f32 1.0, %v167
    %v169 = vrcp.pop %v152
    %v170 = vmul.f32 1.0, %v169
    %v171 = vrcp.pop %v153
    %v172 = vmul.f32 1.0, %v171
    %v173 = vrcp.pop %v154
    %v174 = vmul.f32 1.0, %v173
    %v175 = vrcp.pop %v155
    %v176 = vmul.f32 1.0, %v175
    %v177 = vrcp.pop %v156
    %v178 = vmul.f32 1.0, %v177
    %v179 = vrcp.pop %v157
    %v180 = vmul.f32 1.0, %v179
    %v181 = vrcp.pop %v158
    %v182 = vmul.f32 1.0, %v181
    %v183 = vrcp.pop %v159
    %v184 = vmul.f32 1.0, %v183
    %v185 = vrcp.pop %v160
    %v186 = vmul.f32 1.0, %v185
    %v187 = vrcp.pop %v161
    %v188 = vmul.f32 1.0, %v187
    %v189 = vrcp.pop %v162
    %v190 = vmul.f32 1.0, %v189
    %v191 = vrcp.pop %v163
    %v192 = vmul.f32 1.0, %v191
    %v193 = vrcp.pop %v164
    %v194 = vmul.f32 1.0, %v193
    %v195 = vrcp.pop %v165
    %v196 = vmul.f32 1.0, %v195
    %v197 = vrcp.pop %v166
    %v198 = vmul.f32 1.0, %v197
    %199 = vst [vmem:[#allocation5] sm:$0xff] %v168
    %200 = vst [vmem:[#allocation5 + $0x8] sm:$0xff] %v170
    %201 = vst [vmem:[#allocation5 + $0x10] sm:$0xff] %v172
    %202 = vst [vmem:[#allocation5 + $0x18] sm:$0xff] %v174
    %203 = vst [vmem:[#allocation5 + $0x20] sm:$0xff] %v176
    %204 = vst [vmem:[#allocation5 + $0x28] sm:$0xff] %v178
    %205 = vst [vmem:[#allocation5 + $0x30] sm:$0xff] %v180
    %206 = vst [vmem:[#allocation5 + $0x38] sm:$0xff] %v182
    %207 = vst [vmem:[#allocation5 + $0x40] sm:$0xff] %v184
    %208 = vst [vmem:[#allocation5 + $0x48] sm:$0xff] %v186
    %209 = vst [vmem:[#allocation5 + $0x50] sm:$0xff] %v188
    %210 = vst [vmem:[#allocation5 + $0x58] sm:$0xff] %v190
    %211 = vst [vmem:[#allocation5 + $0x60] sm:$0xff] %v192
    %212 = vst [vmem:[#allocation5 + $0x68] sm:$0xff] %v194
    %213 = vst [vmem:[#allocation5 + $0x70] sm:$0xff] %v196
    %214 = vst [vmem:[#allocation5 + $0x78] sm:$0xff] %v198
    // Predicated region
    $region10: #{tpu_custom_call.1} parent=1 // pred_check
      _
    $region11: #{tpu_custom_call.1} parent=1 // pred_check_branch
      %216 = sbr.rel (0) target = $region13
    $region12: #{tpu_custom_call.1} parent=1 // pred_region
      %s218 = ssub.s32 2048, 2048
      %219 = vsyncadd [#allocation4], %s218
      %s220 = sshll.u32 [#allocation5], 4
      %s221 = int_to_ptr.vmem [resolvable:$true] %s220
      %226 = dma.vmem_to_hbm [thread:$0]  %s221, 2048, %s1, [#allocation4], 256, 256, 16
    $region13: #{tpu_custom_call.1} parent=1 // pred_fallthru
      _
    // Predicated region
    $region14: #{tpu_custom_call.1} parent=1 // pred_check
      _
    $region15: #{tpu_custom_call.1} parent=1 // pred_check_branch
      %228 = sbr.rel (0) target = $region17
    $region16: #{tpu_custom_call.1} parent=1 // pred_region
      %229 = dma.done [#allocation4], 2048
    $region17: #{tpu_custom_call.1} parent=1 // pred_fallthru
      _
    %230 = vsyncpa [#allocation3], 1
    %231 = vsyncpa [#allocation4], 1

</llo_original>
